<compile_context>
chip_gen: v7x
topology: tpu7x:2x2x1
jax: 0.10.0
libtpu: 0.0.40
codegen_flags: <defaults>
</compile_context>

<pallas_src>
import functools

import jax
import jax.numpy as jnp
import numpy as np
from jax.experimental import pallas as pl
from jax.experimental.pallas import tpu as pltpu


def _unary_kernel(x_ref, t1_ref, b1_ref, t2_ref, b2_ref, o_ref, *, HP):
    """Both convs fused; one grid step processes a group of whole images.

    x_ref  : (M, L)    row-pair-folded activations, M = images_per_step * HP
    t1_ref : (3*L, L)  conv1 stacked block-Toeplitz slab [A; B; C]
    b1_ref : (1, L)    conv1 bias tiled across (row-pair, W)
    t2_ref : (3*L, L)  conv2 stacked slab
    b2_ref : (1, L)    conv2 bias
    o_ref  : (M, L)    output (lane-dense, unmasked stores)
    HP     : folded rows per image (H // RP); border masks are periodic in HP,
             which also cuts roll wrap-around between images stacked along M.
    """
    f32 = jnp.float32
    x = x_ref[...].astype(f32)                         # residual / conv1 input
    M, L = x.shape

    # Per-image first/last folded-row masks ("same" zero padding in H).
    rid = jax.lax.broadcasted_iota(jnp.int32, (M, L), 0) % HP
    not_first = rid != 0
    not_last = rid != (HP - 1)

    def conv(a, t_ref, b_ref):
        # +-1 folded-row shifts on the XLU; wrapped border rows masked to the
        # zero padding.  No VMEM scratch, no unaligned sublane slices.
        prev = jnp.where(not_first, pltpu.roll(a, 1, axis=0), 0.0)
        nxt = jnp.where(not_last, pltpu.roll(a, M - 1, axis=0), 0.0)
        a3 = jnp.concatenate([prev, a, nxt], axis=1)   # (M, 3L), 128-aligned
        a3 = a3.astype(t_ref.dtype)                    # bf16 opt-in for MXU
        return jnp.dot(a3, t_ref[...], preferred_element_type=f32) + b_ref[...]

    y = jnp.maximum(conv(x, t1_ref, b1_ref), 0.0)      # stays in VMEM/vregs
    out = conv(y, t2_ref, b2_ref) + x                  # residual + bias in f32
    o_ref[...] = jnp.maximum(out, 0.0).astype(o_ref.dtype)


def _toeplitz_rows(w, W):
    """(3, 3, Ci, Co) conv weights -> (3, W*Ci, W*Co) per-ky Toeplitz slabs.

    T[ky][wi*Ci + ci, wo*Co + co] = w[ky, wi - wo + 1, ci, co] if |wi-wo|<=1
    else 0: the width-direction "same" conv (incl. its zero padding) as a
    plain matmul over the lane-folded W*C axis.
    """
    K, _, Ci, Co = w.shape
    wi = jnp.arange(W)
    wo = jnp.arange(W)
    dx = wi[:, None] - wo[None, :] + 1                 # (W, W) kw index
    valid = (dx >= 0) & (dx <= 2)
    t = w[:, jnp.clip(dx, 0, 2), :, :]                 # (K, W, W, Ci, Co)
    t = t * valid[None, :, :, None, None].astype(w.dtype)
    t = jnp.transpose(t, (0, 1, 3, 2, 4))              # (K, wi, ci, wo, co)
    return t.reshape(K, W * Ci, W * Co)


def _stacked_slab(w, W, RP):
    """Single (3*RP*W*Ci, RP*W*Co) slab S such that, on row-(RP)-folded
    activations, the full 3x3 "same" conv is concat([x[p-1], x[p], x[p+1]],
    lanes) @ S.  For RP=2 the blocks are half-zero band matrices (free MXU
    slack); row order matches the [prev | cur | next] lane order in-kernel."""
    T = _toeplitz_rows(w, W)                           # (3, WC, WC)
    if RP == 1:
        return jnp.concatenate([T[0], T[1], T[2]], axis=0)
    assert RP == 2
    Z = jnp.zeros_like(T[0])
    row = lambda l, r: jnp.concatenate([l, r], axis=1)
    A = jnp.concatenate([row(Z, Z), row(T[0], Z)], axis=0)           # prev pair
    B = jnp.concatenate([row(T[1], T[0]), row(T[2], T[1])], axis=0)  # current
    C = jnp.concatenate([row(Z, T[2]), row(Z, Z)], axis=0)           # next pair
    return jnp.concatenate([A, B, C], axis=0)          # (3*2WC, 2WC)


def _pick_groups(N, HP):
    """<= 2 grid steps: one per v7x TensorCore ("parallel"); remaining batch is
    folded into sublanes so single-TC v5e/v6e don't pay per-image step cost."""
    for g in (2, 1):
        if g <= N and N % g == 0 and ((N // g) * HP) % 8 == 0:
            return g
    return 1


def unary_module_forward(x_nhwc, params, matmul_dtype=jnp.float32):
    """Pallas version of UnaryModule.forward (NHWC in / NHWC out)."""
    w1, b1, w2, b2 = params
    N, H, W, C = x_nhwc.shape
    WC = W * C

    # Fold pairs of H rows into lanes when WC alone isn't 128-lane dense.
    RP = 2 if (H % 2 == 0 and WC % 128 != 0) else 1
    HP = H // RP
    L = RP * WC

    # Weight / bias plumbing (tiny, outside the kernel).
    t1 = _stacked_slab(w1, W, RP).astype(matmul_dtype)   # (3L, L)
    t2 = _stacked_slab(w2, W, RP).astype(matmul_dtype)
    b1l = jnp.tile(b1, RP * W).reshape(1, L).astype(jnp.float32)
    b2l = jnp.tile(b2, RP * W).reshape(1, L).astype(jnp.float32)
    x2d = x_nhwc.reshape(N * HP, L)                      # free flat reshape

    G = _pick_groups(N, HP)
    MB = (N // G) * HP                                   # rows per grid step

    kernel = functools.partial(_unary_kernel, HP=HP)
    out2d = pl.pallas_call(
        kernel,
        out_shape=jax.ShapeDtypeStruct((N * HP, L), x_nhwc.dtype),
        grid_spec=pltpu.PrefetchScalarGridSpec(
            num_scalar_prefetch=0,
            grid=(G,),
            in_specs=[
                pl.BlockSpec((MB, L), lambda g: (g, 0)),
                # Constant-index weight/bias slabs (resident across the grid).
                pl.BlockSpec((3 * L, L), lambda g: (0, 0)),
                pl.BlockSpec((1, L), lambda g: (0, 0)),
                pl.BlockSpec((3 * L, L), lambda g: (0, 0)),
                pl.BlockSpec((1, L), lambda g: (0, 0)),
            ],
            out_specs=pl.BlockSpec((MB, L), lambda g: (g, 0)),
        ),
        compiler_params=pltpu.CompilerParams(
            dimension_semantics=("parallel",)),
    )(x2d, t1, b1l, t2, b2l)
    return out2d.reshape(N, H, W, C)


def _ref_forward(x_nhwc, params):
    """Pure-JAX reference (lax conv) for correctness checking."""
    w1, b1, w2, b2 = params
    dn = jax.lax.conv_dimension_numbers(
        x_nhwc.shape, w1.shape, ("NHWC", "HWIO", "NHWC"))
    y = jax.lax.conv_general_dilated(
        x_nhwc, w1, (1, 1), "SAME", dimension_numbers=dn) + b1
    y = jnp.maximum(y, 0.0)
    z = jax.lax.conv_general_dilated(
        y, w2, (1, 1), "SAME", dimension_numbers=dn) + b2
    return jnp.maximum(z + x_nhwc, 0.0)


if __name__ == "__main__":
    N, C, H, W = 2, 4, 16, 16   # batch, channels (h), spatial
    key = jax.random.PRNGKey(0)
    k1, k2, k3, k4, k5 = jax.random.split(key, 5)

    # Deterministic synthetic parameters, layout (kh, kw, Cin, Cout).
    fan_in = 3 * 3 * C
    w1 = jax.random.normal(k1, (3, 3, C, C), jnp.float32) * (2.0 / fan_in) ** 0.5
    b1 = jax.random.normal(k2, (C,), jnp.float32) * 0.1
    w2 = jax.random.normal(k3, (3, 3, C, C), jnp.float32) * (2.0 / fan_in) ** 0.5
    b2 = jax.random.normal(k4, (C,), jnp.float32) * 0.1
    params = (w1, b1, w2, b2)

    # Input in PyTorch's NCHW convention, transposed to NHWC for the kernel.
    x_nchw = jax.random.normal(k5, (N, C, H, W), jnp.float32)
    x = jnp.transpose(x_nchw, (0, 2, 3, 1))

    out = jax.block_until_ready(unary_module_forward(x, params))
    assert out.shape == (N, H, W, C)

    ref = _ref_forward(x, params)
    np.testing.assert_allclose(np.asarray(out), np.asarray(ref),
                               rtol=1e-2, atol=1e-2)
    print("KERNEL_OK")
</pallas_src>

<mosaic_0001>
module attributes {stable_mosaic.version = 11 : i64} {
  func.func @_unary_kernel(%arg0: i32, %arg1: memref<8x128xf32, #tpu.memory_space<vmem>>, %arg2: memref<384x128xf32, #tpu.memory_space<vmem>>, %arg3: memref<1x128xf32, #tpu.memory_space<vmem>>, %arg4: memref<384x128xf32, #tpu.memory_space<vmem>>, %arg5: memref<1x128xf32, #tpu.memory_space<vmem>>, %arg6: memref<8x128xf32, #tpu.memory_space<vmem>>) attributes {dimension_semantics = [#tpu.dimension_semantics<parallel>], iteration_bounds = array<i64: 2>, scalar_prefetch = 0 : i64, scratch_operands = 0 : i64, tpu.core_type = #tpu.core_type<tc>, window_params = [{transform_indices = @transform_0, window_bounds = array<i64: 8, 128>}, {pipeline_mode = #tpu.pipeline_mode<synchronous>, transform_indices = @transform_1, window_bounds = array<i64: 384, 128>}, {pipeline_mode = #tpu.pipeline_mode<synchronous>, transform_indices = @transform_2, window_bounds = array<i64: 1, 128>}, {pipeline_mode = #tpu.pipeline_mode<synchronous>, transform_indices = @transform_3, window_bounds = array<i64: 384, 128>}, {pipeline_mode = #tpu.pipeline_mode<synchronous>, transform_indices = @transform_4, window_bounds = array<i64: 1, 128>}, {transform_indices = @transform_5, window_bounds = array<i64: 8, 128>}]} {
    %c0 = arith.constant 0 : index
    %c0_0 = arith.constant 0 : index
    %0 = vector.load %arg1[%c0, %c0_0] : memref<8x128xf32, #tpu.memory_space<vmem>>, vector<8x128xf32>
    %1 = tpu.iota {dimensions = array<i32: 0>} : vector<8x128xi32>
    %c8_i32 = arith.constant 8 : i32
    %c0_i32 = arith.constant 0 : i32
    %2 = arith.cmpi eq, %c8_i32, %c0_i32 : i32
    %c1_i32 = arith.constant 1 : i32
    %3 = arith.select %2, %c1_i32, %c8_i32 : i32
    %4 = vector.broadcast %3 : i32 to vector<8x128xi32>
    %5 = arith.remsi %1, %4 : vector<8x128xi32>
    %c0_i32_1 = arith.constant 0 : i32
    %6 = vector.broadcast %c0_i32_1 : i32 to vector<8x128xi32>
    %7 = arith.cmpi ne, %5, %6 : vector<8x128xi32>
    %c0_i32_2 = arith.constant 0 : i32
    %8 = vector.broadcast %c0_i32_2 : i32 to vector<8x128xi32>
    %9 = arith.cmpi slt, %5, %8 : vector<8x128xi32>
    %c0_i32_3 = arith.constant 0 : i32
    %10 = arith.cmpi slt, %3, %c0_i32_3 : i32
    %11 = vector.broadcast %10 : i1 to vector<8x128xi1>
    %12 = vector.broadcast %11 : vector<8x128xi1> to vector<8x128xi1>
    %13 = arith.xori %9, %12 : vector<8x128xi1>
    %14 = arith.andi %13, %7 : vector<8x128xi1>
    %15 = vector.broadcast %3 : i32 to vector<8x128xi32>
    %16 = arith.addi %5, %15 : vector<8x128xi32>
    %17 = arith.select %14, %16, %5 : vector<8x128xi1>, vector<8x128xi32>
    %c0_i32_4 = arith.constant 0 : i32
    %18 = vector.broadcast %c0_i32_4 : i32 to vector<8x128xi32>
    %19 = arith.cmpi ne, %17, %18 : vector<8x128xi32>
    %c7_i32 = arith.constant 7 : i32
    %20 = vector.broadcast %c7_i32 : i32 to vector<8x128xi32>
    %21 = arith.cmpi ne, %17, %20 : vector<8x128xi32>
    %c1_i32_5 = arith.constant 1 : i32
    %22 = tpu.dynamic_rotate %0 by %c1_i32_5 dim 0 : vector<8x128xf32>, i32 -> vector<8x128xf32>
    %cst = arith.constant 0.000000e+00 : f32
    %23 = vector.broadcast %cst : f32 to vector<8x128xf32>
    %24 = arith.select %19, %22, %23 : vector<8x128xi1>, vector<8x128xf32>
    %c7_i32_6 = arith.constant 7 : i32
    %25 = tpu.dynamic_rotate %0 by %c7_i32_6 dim 0 : vector<8x128xf32>, i32 -> vector<8x128xf32>
    %cst_7 = arith.constant 0.000000e+00 : f32
    %26 = vector.broadcast %cst_7 : f32 to vector<8x128xf32>
    %27 = arith.select %21, %25, %26 : vector<8x128xi1>, vector<8x128xf32>
    %28 = tpu.concatenate %24, %0, %27 in 1 : vector<8x128xf32>, vector<8x128xf32>, vector<8x128xf32> -> vector<8x384xf32>
    %c0_8 = arith.constant 0 : index
    %c0_9 = arith.constant 0 : index
    %29 = vector.load %arg2[%c0_8, %c0_9] : memref<384x128xf32, #tpu.memory_space<vmem>>, vector<384x128xf32>
    %cst_10 = arith.constant dense<0.000000e+00> : vector<8x128xf32>
    %30 = tpu.matmul %28, %29, %cst_10 {dimension_numbers = #tpu.dot_dimension_numbers<[1], [0], [0], [1], [0, 0, 1, 1], [], []>} : vector<8x384xf32>, vector<384x128xf32>, vector<8x128xf32> -> vector<8x128xf32>
    %c0_11 = arith.constant 0 : index
    %c0_12 = arith.constant 0 : index
    %31 = vector.load %arg3[%c0_11, %c0_12] : memref<1x128xf32, #tpu.memory_space<vmem>>, vector<1x128xf32>
    %32 = vector.broadcast %31 : vector<1x128xf32> to vector<8x128xf32>
    %33 = arith.addf %30, %32 : vector<8x128xf32>
    %cst_13 = arith.constant 0.000000e+00 : f32
    %34 = vector.broadcast %cst_13 : f32 to vector<8x128xf32>
    %35 = arith.maximumf %33, %34 : vector<8x128xf32>
    %c1_i32_14 = arith.constant 1 : i32
    %36 = tpu.dynamic_rotate %35 by %c1_i32_14 dim 0 : vector<8x128xf32>, i32 -> vector<8x128xf32>
    %cst_15 = arith.constant 0.000000e+00 : f32
    %37 = vector.broadcast %cst_15 : f32 to vector<8x128xf32>
    %38 = arith.select %19, %36, %37 : vector<8x128xi1>, vector<8x128xf32>
    %c7_i32_16 = arith.constant 7 : i32
    %39 = tpu.dynamic_rotate %35 by %c7_i32_16 dim 0 : vector<8x128xf32>, i32 -> vector<8x128xf32>
    %cst_17 = arith.constant 0.000000e+00 : f32
    %40 = vector.broadcast %cst_17 : f32 to vector<8x128xf32>
    %41 = arith.select %21, %39, %40 : vector<8x128xi1>, vector<8x128xf32>
    %42 = tpu.concatenate %38, %35, %41 in 1 : vector<8x128xf32>, vector<8x128xf32>, vector<8x128xf32> -> vector<8x384xf32>
    %c0_18 = arith.constant 0 : index
    %c0_19 = arith.constant 0 : index
    %43 = vector.load %arg4[%c0_18, %c0_19] : memref<384x128xf32, #tpu.memory_space<vmem>>, vector<384x128xf32>
    %cst_20 = arith.constant dense<0.000000e+00> : vector<8x128xf32>
    %44 = tpu.matmul %42, %43, %cst_20 {dimension_numbers = #tpu.dot_dimension_numbers<[1], [0], [0], [1], [0, 0, 1, 1], [], []>} : vector<8x384xf32>, vector<384x128xf32>, vector<8x128xf32> -> vector<8x128xf32>
    %c0_21 = arith.constant 0 : index
    %c0_22 = arith.constant 0 : index
    %45 = vector.load %arg5[%c0_21, %c0_22] : memref<1x128xf32, #tpu.memory_space<vmem>>, vector<1x128xf32>
    %46 = vector.broadcast %45 : vector<1x128xf32> to vector<8x128xf32>
    %47 = arith.addf %44, %46 : vector<8x128xf32>
    %48 = arith.addf %47, %0 : vector<8x128xf32>
    %cst_23 = arith.constant 0.000000e+00 : f32
    %49 = vector.broadcast %cst_23 : f32 to vector<8x128xf32>
    %50 = arith.maximumf %48, %49 : vector<8x128xf32>
    %c0_24 = arith.constant 0 : index
    %c0_25 = arith.constant 0 : index
    %51 = vector.load %arg6[%c0_24, %c0_25] : memref<8x128xf32, #tpu.memory_space<vmem>>, vector<8x128xf32>
    tpu.vector_store %arg6[%c0_24, %c0_25], %50 {strides = array<i32>} : memref<8x128xf32, #tpu.memory_space<vmem>>, vector<8x128xf32>,
    return
  }
  func.func @transform_0(%arg0: i32) -> (i32, i32) {
    %c0_i32 = arith.constant 0 : i32
    %c0_i32_0 = arith.constant 0 : i32
    return %arg0, %c0_i32 : i32, i32
  }
  func.func @transform_1(%arg0: i32) -> (i32, i32) {
    %c0_i32 = arith.constant 0 : i32
    %c0_i32_0 = arith.constant 0 : i32
    %c0_i32_1 = arith.constant 0 : i32
    return %c0_i32, %c0_i32_0 : i32, i32
  }
  func.func @transform_2(%arg0: i32) -> (i32, i32) {
    %c0_i32 = arith.constant 0 : i32
    %c0_i32_0 = arith.constant 0 : i32
    %c0_i32_1 = arith.constant 0 : i32
    return %c0_i32, %c0_i32_0 : i32, i32
  }
  func.func @transform_3(%arg0: i32) -> (i32, i32) {
    %c0_i32 = arith.constant 0 : i32
    %c0_i32_0 = arith.constant 0 : i32
    %c0_i32_1 = arith.constant 0 : i32
    return %c0_i32, %c0_i32_0 : i32, i32
  }
  func.func @transform_4(%arg0: i32) -> (i32, i32) {
    %c0_i32 = arith.constant 0 : i32
    %c0_i32_0 = arith.constant 0 : i32
    %c0_i32_1 = arith.constant 0 : i32
    return %c0_i32, %c0_i32_0 : i32, i32
  }
  func.func @transform_5(%arg0: i32) -> (i32, i32) {
    %c0_i32 = arith.constant 0 : i32
    %c0_i32_0 = arith.constant 0 : i32
    return %arg0, %c0_i32 : i32, i32
  }
}

</mosaic_0001>

<llo_original>
// kernel: tpu_custom_call.1
$region0: #{tpu_custom_call.1}
  #allocation0 [shape = 'u32[]', space=smem, size = 0x4, offset = 0x4, fixed_abs, tag = 'smem constant byte address 0x4 - core index']
  #allocation1 [shape = 'u32[144,128]{1,0:T(1,128)}', space=vmem, size = 0x12000, scoped, tag = 'internal scratch']
  %s0 = inlined_call_operand.hbm [shape: f32[16,128], index: 0, kind: input, shape index: {}]
  %s1 = inlined_call_operand.hbm [shape: f32[384,128], index: 1, kind: input, shape index: {}]
  %s2 = inlined_call_operand.vmem [shape: f32[1,128], index: 2, kind: input, shape index: {}]
  %s3 = inlined_call_operand.hbm [shape: f32[384,128], index: 3, kind: input, shape index: {}]
  %s4 = inlined_call_operand.vmem [shape: f32[1,128], index: 4, kind: input, shape index: {}]
  %s5 = inlined_call_operand.hbm [shape: f32[16,128], index: 5, kind: output, shape index: {}]
  %s6 = sld [smem:[#allocation0]]
  $region65: #{tpu_custom_call.1} parent=0
    _
  %s8 = ssub.s32 1, %s6
  %s9 = scalar_select 0, %s8, %s6
  $region1: #{tpu_custom_call.1} parent=0
    #allocation2 [shape = 'u8[8192]{0}', space=vmem, size = 0x2000, scoped, tag = 'input window, operand 0']
    #allocation3 [shape = 's32[2]{0}', space=sflag, size = 0x8, scoped, tag = 'scoped memory for tpu_custom_call.1']
    #allocation4 [shape = 's32[2]{0}', space=sflag, size = 0x8, scoped, tag = 'scoped memory for tpu_custom_call.1']
    #allocation5 [shape = 'u8[196608]{0}', space=vmem, size = 0x30000, scoped, tag = 'input window, operand 1, single buffered']
    #allocation6 [shape = 's32[1]{0}', space=sflag, size = 0x4, scoped, tag = 'scoped memory for tpu_custom_call.1']
    #allocation7 [shape = 'u8[196608]{0}', space=vmem, size = 0x30000, scoped, tag = 'input window, operand 3, single buffered']
    #allocation8 [shape = 'u8[8192]{0}', space=vmem, size = 0x2000, scoped, tag = 'output window, operand 0']
    %10 = vsyncpa [#allocation3], 0
    %s11 = scalar_lea.sflag [#allocation3], 1
    %12 = vsyncpa %s11, 0
    %13 = vsyncpa [#allocation6], 0
    %14 = vsyncpa [#allocation4], 0
    %s15 = scalar_lea.sflag [#allocation4], 1
    %16 = vsyncpa %s15, 0
    loop: start=0, step=1, limit=4
    $region2: #{tpu_custom_call.1} parent=1 // loop_pre_header
      _
    $region3: #{tpu_custom_call.1} parent=1 // loop_header
      %s18 = sphi 0, %s22
      %p19 = scmp.ge.s32.totalorder %s18, 4
      %s28 = sphi 0, %s30
      %s31 = sphi 0, %s28
      %s32 = sphi 0, %s31
      %s48 = sphi 0, %s32
      %s52 = sphi 0, %s52
      %s54 = sphi 0, %s52
      %s55 = sphi 0, %s54
      %s69 = sphi 0, %s55
      %s73 = sphi 0, %s73
      %s75 = sphi 0, %s73
      %s76 = sphi 0, %s75
      %s90 = sphi 0, %s76
      %s94 = sphi 0, %s94
      %s96 = sphi 0, %s94
      %s97 = sphi 0, %s96
      %s111 = sphi 0, %s97
      %s115 = sphi 0, %s115
      %s117 = sphi 0, %s115
      %s118 = sphi 0, %s117
      %s132 = sphi 0, %s118
      %s138 = sphi 0, %s140
      %s141 = sphi 0, %s138
      %s142 = sphi 0, %s141
      %s158 = sphi 0, %s142
    $region4: #{tpu_custom_call.1} parent=1 // loop_header_branch
      %21 = sbr.rel (%p19) target = $region8
    $region5: #{tpu_custom_call.1} parent=1 // loop_body
      %s23 = ssub.s32 %s18, 1
      %s24 = ssub.s32 %s18, 2
      %s25 = sadd.s32 %s18, 1
      %s26 = ssub.s32 %s18, %s25
      %p27 = scmp.eq.s32.totalorder %s26, 0
      %s29 = sadd.s32 %s28, 1
      %s30 = scalar_select %p27, %s28, %s29
      %p33 = pneg %p27
      %p34 = scmp.eq.s32.totalorder %s18, 1
      %p35 = por %p33, %p34
      %p36 = scmp.ne.s32.totalorder %s28, %s31
      %p37 = scmp.eq.s32.totalorder %s18, 0
      %p38 = por %p36, %p37
      %p39 = scmp.ne.s32.totalorder %s28, %s31
      %p40 = scmp.eq.s32.totalorder %s23, 1
      %p41 = por %p39, %p40
      %p42 = scmp.ne.s32.totalorder %s31, %s32
      %p43 = scmp.eq.s32.totalorder %s23, 0
      %p44 = por %p42, %p43
      %p45 = scmp.ne.s32.totalorder %s31, %s32
      %p46 = scmp.eq.s32.totalorder %s24, 1
      %p47 = por %p45, %p46
      %p49 = scmp.ne.s32.totalorder %s32, %s48
      %p50 = scmp.eq.s32.totalorder %s24, 0
      %p51 = por %p49, %p50
      %s53 = sadd.s32 %s52, 1
      %p56 = scmp.eq.s32.totalorder %s18, 1
      %p57 = scmp.ne.s32.totalorder %s52, %s54
      %p58 = scmp.eq.s32.totalorder %s18, 0
      %p59 = por %p57, %p58
      %p60 = scmp.ne.s32.totalorder %s52, %s54
      %p61 = scmp.eq.s32.totalorder %s23, 1
      %p62 = por %p60, %p61
      %p63 = scmp.ne.s32.totalorder %s54, %s55
      %p64 = scmp.eq.s32.totalorder %s23, 0
      %p65 = por %p63, %p64
      %p66 = scmp.ne.s32.totalorder %s54, %s55
      %p67 = scmp.eq.s32.totalorder %s24, 1
      %p68 = por %p66, %p67
      %p70 = scmp.ne.s32.totalorder %s55, %s69
      %p71 = scmp.eq.s32.totalorder %s24, 0
      %p72 = por %p70, %p71
      %s74 = sadd.s32 %s73, 1
      %p77 = scmp.eq.s32.totalorder %s18, 1
      %p78 = scmp.ne.s32.totalorder %s73, %s75
      %p79 = scmp.eq.s32.totalorder %s18, 0
      %p80 = por %p78, %p79
      %p81 = scmp.ne.s32.totalorder %s73, %s75
      %p82 = scmp.eq.s32.totalorder %s23, 1
      %p83 = por %p81, %p82
      %p84 = scmp.ne.s32.totalorder %s75, %s76
      %p85 = scmp.eq.s32.totalorder %s23, 0
      %p86 = por %p84, %p85
      %p87 = scmp.ne.s32.totalorder %s75, %s76
      %p88 = scmp.eq.s32.totalorder %s24, 1
      %p89 = por %p87, %p88
      %p91 = scmp.ne.s32.totalorder %s76, %s90
      %p92 = scmp.eq.s32.totalorder %s24, 0
      %p93 = por %p91, %p92
      %s95 = sadd.s32 %s94, 1
      %p98 = scmp.eq.s32.totalorder %s18, 1
      %p99 = scmp.ne.s32.totalorder %s94, %s96
      %p100 = scmp.eq.s32.totalorder %s18, 0
      %p101 = por %p99, %p100
      %p102 = scmp.ne.s32.totalorder %s94, %s96
      %p103 = scmp.eq.s32.totalorder %s23, 1
      %p104 = por %p102, %p103
      %p105 = scmp.ne.s32.totalorder %s96, %s97
      %p106 = scmp.eq.s32.totalorder %s23, 0
      %p107 = por %p105, %p106
      %p108 = scmp.ne.s32.totalorder %s96, %s97
      %p109 = scmp.eq.s32.totalorder %s24, 1
      %p110 = por %p108, %p109
      %p112 = scmp.ne.s32.totalorder %s97, %s111
      %p113 = scmp.eq.s32.totalorder %s24, 0
      %p114 = por %p112, %p113
      %s116 = sadd.s32 %s115, 1
      %p119 = scmp.eq.s32.totalorder %s18, 1
      %p120 = scmp.ne.s32.totalorder %s115, %s117
      %p121 = scmp.eq.s32.totalorder %s18, 0
      %p122 = por %p120, %p121
      %p123 = scmp.ne.s32.totalorder %s115, %s117
      %p124 = scmp.eq.s32.totalorder %s23, 1
      %p125 = por %p123, %p124
      %p126 = scmp.ne.s32.totalorder %s117, %s118
      %p127 = scmp.eq.s32.totalorder %s23, 0
      %p128 = por %p126, %p127
      %p129 = scmp.ne.s32.totalorder %s117, %s118
      %p130 = scmp.eq.s32.totalorder %s24, 1
      %p131 = por %p129, %p130
      %p133 = scmp.ne.s32.totalorder %s118, %s132
      %p134 = scmp.eq.s32.totalorder %s24, 0
      %p135 = por %p133, %p134
      %s136 = ssub.s32 %s18, %s25
      %p137 = scmp.eq.s32.totalorder %s136, 0
      %s139 = sadd.s32 %s138, 1
      %s140 = scalar_select %p137, %s138, %s139
      %p143 = pneg %p137
      %p144 = scmp.eq.s32.totalorder %s18, 1
      %p145 = por %p143, %p144
      %p146 = scmp.ne.s32.totalorder %s138, %s141
      %p147 = scmp.eq.s32.totalorder %s18, 0
      %p148 = por %p146, %p147
      %p149 = scmp.ne.s32.totalorder %s138, %s141
      %p150 = scmp.eq.s32.totalorder %s23, 1
      %p151 = por %p149, %p150
      %p152 = scmp.ne.s32.totalorder %s141, %s142
      %p153 = scmp.eq.s32.totalorder %s23, 0
      %p154 = por %p152, %p153
      %p155 = scmp.ne.s32.totalorder %s141, %s142
      %p156 = scmp.eq.s32.totalorder %s24, 1
      %p157 = por %p155, %p156
      %p159 = scmp.ne.s32.totalorder %s142, %s158
      %p160 = scmp.eq.s32.totalorder %s24, 0
      %p161 = por %p159, %p160
      %p162 = scmp.le.s32.totalorder 1, %s18
      %p163 = scmp.lt.s32.totalorder %s18, 3
      %p164 = pnand %p162, %p163
      %p165 = pneg %p164
      // Predicated region
      $region9: #{tpu_custom_call.1} parent=5 // pred_check
        _
      $region10: #{tpu_custom_call.1} parent=5 // pred_check_branch
        %167 = sbr.rel (%p164) target = $region12
      $region11: #{tpu_custom_call.1} parent=5 // pred_region
        %s168 = ssub.s32 %s18, 1
        // Predicated region
        $region13: #{tpu_custom_call.1} parent=11 // pred_check
          %p169 = pneg %p65
        $region14: #{tpu_custom_call.1} parent=11 // pred_check_branch
          %171 = sbr.rel (%p169) target = $region16
        $region15: #{tpu_custom_call.1} parent=11 // pred_region
          %s173 = ssub.s32 6144, 6144
          %174 = vsyncadd [#allocation6], %s173
          %s175 = sshll.u32 [#allocation5], 4
          %s176 = int_to_ptr.vmem [resolvable:$true] %s175
          %181 = dma.hbm_to_vmem [thread:$0]  %s1, 6144, %s176, [#allocation6], 128, 128, 8
        $region16: #{tpu_custom_call.1} parent=11 // pred_fallthru
          _
        // Predicated region
        $region17: #{tpu_custom_call.1} parent=11 // pred_check
          %p182 = pneg %p86
        $region18: #{tpu_custom_call.1} parent=11 // pred_check_branch
          %184 = sbr.rel (%p182) target = $region20
        $region19: #{tpu_custom_call.1} parent=11 // pred_region
          _
        $region20: #{tpu_custom_call.1} parent=11 // pred_fallthru
          _
        // Predicated region
        $region21: #{tpu_custom_call.1} parent=11 // pred_check
          %p185 = pneg %p107
        $region22: #{tpu_custom_call.1} parent=11 // pred_check_branch
          %187 = sbr.rel (%p185) target = $region24
        $region23: #{tpu_custom_call.1} parent=11 // pred_region
          %s189 = ssub.s32 6144, 6144
          %190 = vsyncadd [#allocation6], %s189
          %s191 = sshll.u32 [#allocation7], 4
          %s192 = int_to_ptr.vmem [resolvable:$true] %s191
          %197 = dma.hbm_to_vmem [thread:$0]  %s3, 6144, %s192, [#allocation6], 128, 128, 8
        $region24: #{tpu_custom_call.1} parent=11 // pred_fallthru
          _
        // Predicated region
        $region25: #{tpu_custom_call.1} parent=11 // pred_check
          %p198 = pneg %p128
        $region26: #{tpu_custom_call.1} parent=11 // pred_check_branch
          %200 = sbr.rel (%p198) target = $region28
        $region27: #{tpu_custom_call.1} parent=11 // pred_region
          _
        $region28: #{tpu_custom_call.1} parent=11 // pred_fallthru
          _
      $region12: #{tpu_custom_call.1} parent=5 // pred_fallthru
        _
      %p201 = scmp.lt.s32.totalorder %s18, 2
      // Predicated region
      $region29: #{tpu_custom_call.1} parent=5 // pred_check
        %p202 = pneg %p201
      $region30: #{tpu_custom_call.1} parent=5 // pred_check_branch
        %204 = sbr.rel (%p202) target = $region32
      $region31: #{tpu_custom_call.1} parent=5 // pred_region
        // Predicated region
        $region33: #{tpu_custom_call.1} parent=31 // pred_check
          %p205 = pneg %p38
        $region34: #{tpu_custom_call.1} parent=31 // pred_check_branch
          %207 = sbr.rel (%p205) target = $region36
        $region35: #{tpu_custom_call.1} parent=31 // pred_region
          %s208 = sand.u32 %s28, 1
          %s209 = scalar_lea.sflag [#allocation3], %s208
          %s210 = sand.u32 %s28, 1
          %s211 = smul.addr %s210, 8
          %s212 = scalar_lea.vmem [#allocation2], %s211
          %s214 = ssub.s32 128, 128
          %215 = vsyncadd %s209, %s214
          %s216 = smul.addr %s18, 128
          %s217 = scalar_lea.hbm %s0, %s216
          %s219 = sshll.u32 %s212, 4
          %s220 = int_to_ptr.vmem [resolvable:$true] %s219
          %222 = dma.hbm_to_vmem [thread:$0]  %s217, 128, %s220, %s209
        $region36: #{tpu_custom_call.1} parent=31 // pred_fallthru
          _
      $region32: #{tpu_custom_call.1} parent=5 // pred_fallthru
        _
      %p223 = scmp.le.s32.totalorder 1, %s18
      %p224 = scmp.lt.s32.totalorder %s18, 3
      %p225 = pnand %p223, %p224
      %p226 = pneg %p225
      // Predicated region
      $region37: #{tpu_custom_call.1} parent=5 // pred_check
        _
      $region38: #{tpu_custom_call.1} parent=5 // pred_check_branch
        %228 = sbr.rel (%p225) target = $region40
      $region39: #{tpu_custom_call.1} parent=5 // pred_region
        %s229 = ssub.s32 %s18, 1
        %s230 = sand.u32 %s31, 1
        %s231 = scalar_lea.sflag [#allocation3], %s230
        %s232 = sand.u32 %s31, 1
        %s233 = smul.addr %s232, 8
        %s234 = scalar_lea.vmem [#allocation2], %s233
        // Predicated region
        $region41: #{tpu_custom_call.1} parent=39 // pred_check
          %p235 = pneg %p44
        $region42: #{tpu_custom_call.1} parent=39 // pred_check_branch
          %237 = sbr.rel (%p235) target = $region44
        $region43: #{tpu_custom_call.1} parent=39 // pred_region
          %238 = dma.done %s231, 128
        $region44: #{tpu_custom_call.1} parent=39 // pred_fallthru
          _
        // Predicated region
        $region45: #{tpu_custom_call.1} parent=39 // pred_check
          %p239 = pneg %p65
        $region46: #{tpu_custom_call.1} parent=39 // pred_check_branch
          %241 = sbr.rel (%p239) target = $region48
        $region47: #{tpu_custom_call.1} parent=39 // pred_region
          %242 = dma.done [#allocation6], 6144
        $region48: #{tpu_custom_call.1} parent=39 // pred_fallthru
          _
        // Predicated region
        $region49: #{tpu_custom_call.1} parent=39 // pred_check
          %p243 = pneg %p107
        $region50: #{tpu_custom_call.1} parent=39 // pred_check_branch
          %245 = sbr.rel (%p243) target = $region52
        $region51: #{tpu_custom_call.1} parent=39 // pred_region
          %246 = dma.done [#allocation6], 6144
        $region52: #{tpu_custom_call.1} parent=39 // pred_fallthru
          _
        %s247 = sand.u32 %s31, 1
        %s248 = scalar_lea.sflag [#allocation3], %s247
        %s249 = sand.u32 %s31, 1
        %s250 = smul.addr %s249, 8
        %s251 = scalar_lea.vmem [#allocation2], %s250
        %p252 = pneg %p44
        %p253 = pneg %p41
        %p254 = pneg %p65
        %p255 = pneg %p62
        %p256 = pneg %p86
        %p257 = pneg %p83
        %p258 = pneg %p107
        %p259 = pneg %p104
        %p260 = pneg %p128
        %p261 = pneg %p125
        %p262 = pneg %p154
        %p263 = pneg %p151
        %s264 = sand.u32 %s141, 1
        %s265 = scalar_lea.sflag [#allocation4], %s264
        %s266 = sand.u32 %s141, 1
        %s267 = smul.addr %s266, 8
        %s268 = scalar_lea.vmem [#allocation8], %s267
        %v269 = vld [vmem:[%s234] sm:$0xff]
        %v270 = vlaneseq
        %v271 = vshrl.u32 %v270, 7
        %vm272 = vcmp.lt.s32.totalorder %v271, 0
        %v273 = vsub.s32 0, %v271
        %v274 = vsel %vm272, %v273, %v271
        %v275 = vshrl.u32 %v274, 3
        %v276 = vand.u32 %v274, 7
        %v277 = vsub.s32 0, %v276
        %v278 = vsel %vm272, %v277, %v276
        %vm279 = vcmp.ne.s32.totalorder %v278, 0
        %vm280 = vcmp.lt.s32.totalorder %v278, 0
        %vm281 = vmand %vm280, %vm279
        %v282 = vadd.s32 %v278, 8
        %v283 = vsel %vm281, %v282, %v278
        %vm284 = vcmp.ne.s32.totalorder %v283, 0
        %vm285 = vcmp.ne.s32.totalorder %v283, 7
        %v286 = vrot.slane %v269, 7
        %v287 = vsel %vm284, %v286, 0.0
        %v288 = vrot.slane %v269, 1
        %v289 = vsel %vm285, %v288, 0.0
        %v290 = vld [vmem:[#allocation5] sm:$0xff]
        %v291 = vld [vmem:[#allocation5 + $0x8] sm:$0xff]
        %v292 = vld [vmem:[#allocation5 + $0x10] sm:$0xff]
        %v293 = vld [vmem:[#allocation5 + $0x18] sm:$0xff]
        %v294 = vld [vmem:[#allocation5 + $0x20] sm:$0xff]
        %v295 = vld [vmem:[#allocation5 + $0x28] sm:$0xff]
        %v296 = vld [vmem:[#allocation5 + $0x30] sm:$0xff]
        %v297 = vld [vmem:[#allocation5 + $0x38] sm:$0xff]
        %v298 = vld [vmem:[#allocation5 + $0x40] sm:$0xff]
        %v299 = vld [vmem:[#allocation5 + $0x48] sm:$0xff]
        %v300 = vld [vmem:[#allocation5 + $0x50] sm:$0xff]
        %v301 = vld [vmem:[#allocation5 + $0x58] sm:$0xff]
        %v302 = vld [vmem:[#allocation5 + $0x60] sm:$0xff]
        %v303 = vld [vmem:[#allocation5 + $0x68] sm:$0xff]
        %v304 = vld [vmem:[#allocation5 + $0x70] sm:$0xff]
        %v305 = vld [vmem:[#allocation5 + $0x78] sm:$0xff]
        %v306 = vld [vmem:[#allocation5 + $0x80] sm:$0xff]
        %v307 = vld [vmem:[#allocation5 + $0x88] sm:$0xff]
        %v308 = vld [vmem:[#allocation5 + $0x90] sm:$0xff]
        %v309 = vld [vmem:[#allocation5 + $0x98] sm:$0xff]
        %v310 = vld [vmem:[#allocation5 + $0xa0] sm:$0xff]
        %v311 = vld [vmem:[#allocation5 + $0xa8] sm:$0xff]
        %v312 = vld [vmem:[#allocation5 + $0xb0] sm:$0xff]
        %v313 = vld [vmem:[#allocation5 + $0xb8] sm:$0xff]
        %v314 = vld [vmem:[#allocation5 + $0xc0] sm:$0xff]
        %v315 = vld [vmem:[#allocation5 + $0xc8] sm:$0xff]
        %v316 = vld [vmem:[#allocation5 + $0xd0] sm:$0xff]
        %v317 = vld [vmem:[#allocation5 + $0xd8] sm:$0xff]
        %v318 = vld [vmem:[#allocation5 + $0xe0] sm:$0xff]
        %v319 = vld [vmem:[#allocation5 + $0xe8] sm:$0xff]
        %v320 = vld [vmem:[#allocation5 + $0xf0] sm:$0xff]
        %v321 = vld [vmem:[#allocation5 + $0xf8] sm:$0xff]
        %v322 = vld [vmem:[#allocation5 + $0x100] sm:$0xff]
        %v323 = vld [vmem:[#allocation5 + $0x108] sm:$0xff]
        %v324 = vld [vmem:[#allocation5 + $0x110] sm:$0xff]
        %v325 = vld [vmem:[#allocation5 + $0x118] sm:$0xff]
        %v326 = vld [vmem:[#allocation5 + $0x120] sm:$0xff]
        %v327 = vld [vmem:[#allocation5 + $0x128] sm:$0xff]
        %v328 = vld [vmem:[#allocation5 + $0x130] sm:$0xff]
        %v329 = vld [vmem:[#allocation5 + $0x138] sm:$0xff]
        %v330 = vld [vmem:[#allocation5 + $0x140] sm:$0xff]
        %v331 = vld [vmem:[#allocation5 + $0x148] sm:$0xff]
        %v332 = vld [vmem:[#allocation5 + $0x150] sm:$0xff]
        %v333 = vld [vmem:[#allocation5 + $0x158] sm:$0xff]
        %v334 = vld [vmem:[#allocation5 + $0x160] sm:$0xff]
        %v335 = vld [vmem:[#allocation5 + $0x168] sm:$0xff]
        %v336 = vld [vmem:[#allocation5 + $0x170] sm:$0xff]
        %v337 = vld [vmem:[#allocation5 + $0x178] sm:$0xff]
        %v338 = vld [vmem:[%s2] sm:$0x1]
        %v340 = vlaneseq
        %v341 = vshrl.u32 %v340, 7
        %v342 = vsub.s32 0, %v341
        %v343 = vrot.slane %v338, %v342
        %345 = vmatprep.subr.mxu0 0.0
        %346 = vmatpush1.msra.mxu0 %v290
        %347 = vmatprep.subr.mxu0 0.0
        %348 = vmatpush1.msra.mxu0 %v291
        %349 = vmatprep.subr.mxu0 0.0
        %350 = vmatpush1.msra.mxu0 %v292
        %351 = vmatprep.subr.mxu0 0.0
        %352 = vmatpush1.msra.mxu0 %v293
        %353 = vmatprep.subr.mxu0 0.0
        %354 = vmatpush1.msra.mxu0 %v294
        %355 = vmatprep.subr.mxu0 0.0
        %356 = vmatpush1.msra.mxu0 %v295
        %357 = vmatprep.subr.mxu0 0.0
        %358 = vmatpush1.msra.mxu0 %v296
        %359 = vmatprep.subr.mxu0 0.0
        %360 = vmatpush1.msra.mxu0 %v297
        %361 = vmatprep.subr.mxu0 0.0
        %362 = vmatpush1.msra.mxu0 %v298
        %363 = vmatprep.subr.mxu0 0.0
        %364 = vmatpush1.msra.mxu0 %v299
        %365 = vmatprep.subr.mxu0 0.0
        %366 = vmatpush1.msra.mxu0 %v300
        %367 = vmatprep.subr.mxu0 0.0
        %368 = vmatpush1.msra.mxu0 %v301
        %369 = vmatprep.subr.mxu0 0.0
        %370 = vmatpush1.msra.mxu0 %v302
        %371 = vmatprep.subr.mxu0 0.0
        %372 = vmatpush1.msra.mxu0 %v303
        %373 = vmatprep.subr.mxu0 0.0
        %374 = vmatpush1.msra.mxu0 %v304
        %375 = vmatprep.subr.mxu0 0.0
        %376 = vmatpush1.msra.mxu0 %v305
        %377 = vmatprep.subr.mxu0 0.0
        %378 = vmatpush1.msra.mxu0 %v306
        %379 = vmatprep.subr.mxu0 0.0
        %380 = vmatpush1.msra.mxu0 %v307
        %381 = vmatprep.subr.mxu0 0.0
        %382 = vmatpush1.msra.mxu0 %v308
        %383 = vmatprep.subr.mxu0 0.0
        %384 = vmatpush1.msra.mxu0 %v309
        %385 = vmatprep.subr.mxu0 0.0
        %386 = vmatpush1.msra.mxu0 %v310
        %387 = vmatprep.subr.mxu0 0.0
        %388 = vmatpush1.msra.mxu0 %v311
        %389 = vmatprep.subr.mxu0 0.0
        %390 = vmatpush1.msra.mxu0 %v312
        %391 = vmatprep.subr.mxu0 0.0
        %392 = vmatpush1.msra.mxu0 %v313
        %393 = vmatprep.subr.mxu0 0.0
        %394 = vmatpush1.msra.mxu0 %v314
        %395 = vmatprep.subr.mxu0 0.0
        %396 = vmatpush1.msra.mxu0 %v315
        %397 = vmatprep.subr.mxu0 0.0
        %398 = vmatpush1.msra.mxu0 %v316
        %399 = vmatprep.subr.mxu0 0.0
        %400 = vmatpush1.msra.mxu0 %v317
        %401 = vmatprep.subr.mxu0 0.0
        %402 = vmatpush1.msra.mxu0 %v318
        %403 = vmatprep.subr.mxu0 0.0
        %404 = vmatpush1.msra.mxu0 %v319
        %405 = vmatprep.subr.mxu0 0.0
        %406 = vmatpush1.msra.mxu0 %v320
        %407 = vmatprep.subr.mxu0 0.0
        %408 = vmatpush1.msra.mxu0 %v321
        %409 = vmatprep.mubr.f32.mxu0 %v269
        %410 = vmatmul.mubr.f32.gmra.mrb[0].mxu0 %v287
        %v411 = vpop.f32.mrb[0].mxu0
        %v412 = vadd.f32 %v343, %v411
        %v413 = vpop.f32.mrb[0].mxu0
        %414 = vdwg.mxu0
        %415 = vmatprep.subr.mxu0 0.0
        %416 = vmatpush1.msra.mxu0 %v322
        %417 = vmatprep.subr.mxu0 0.0
        %418 = vmatpush1.msra.mxu0 %v323
        %419 = vmatprep.subr.mxu0 0.0
        %420 = vmatpush1.msra.mxu0 %v324
        %421 = vmatprep.subr.mxu0 0.0
        %422 = vmatpush1.msra.mxu0 %v325
        %423 = vmatprep.subr.mxu0 0.0
        %424 = vmatpush1.msra.mxu0 %v326
        %425 = vmatprep.subr.mxu0 0.0
        %426 = vmatpush1.msra.mxu0 %v327
        %427 = vmatprep.subr.mxu0 0.0
        %428 = vmatpush1.msra.mxu0 %v328
        %429 = vmatprep.subr.mxu0 0.0
        %430 = vmatpush1.msra.mxu0 %v329
        %431 = vmatprep.subr.mxu0 0.0
        %432 = vmatpush1.msra.mxu0 %v330
        %433 = vmatprep.subr.mxu0 0.0
        %434 = vmatpush1.msra.mxu0 %v331
        %435 = vmatprep.subr.mxu0 0.0
        %436 = vmatpush1.msra.mxu0 %v332
        %437 = vmatprep.subr.mxu0 0.0
        %438 = vmatpush1.msra.mxu0 %v333
        %439 = vmatprep.subr.mxu0 0.0
        %440 = vmatpush1.msra.mxu0 %v334
        %441 = vmatprep.subr.mxu0 0.0
        %442 = vmatpush1.msra.mxu0 %v335
        %443 = vmatprep.subr.mxu0 0.0
        %444 = vmatpush1.msra.mxu0 %v336
        %445 = vmatprep.subr.mxu0 0.0
        %446 = vmatpush1.msra.mxu0 %v337
        %447 = vmatprep.subr.mxu0 0.0
        %448 = vmatpush1.msra.mxu0 0.0
        %449 = vmatprep.subr.mxu0 0.0
        %450 = vmatpush1.msra.mxu0 0.0
        %451 = vmatprep.subr.mxu0 0.0
        %452 = vmatpush1.msra.mxu0 0.0
        %453 = vmatprep.subr.mxu0 0.0
        %454 = vmatpush1.msra.mxu0 0.0
        %455 = vmatprep.subr.mxu0 0.0
        %456 = vmatpush1.msra.mxu0 0.0
        %457 = vmatprep.subr.mxu0 0.0
        %458 = vmatpush1.msra.mxu0 0.0
        %459 = vmatprep.subr.mxu0 0.0
        %460 = vmatpush1.msra.mxu0 0.0
        %461 = vmatprep.subr.mxu0 0.0
        %462 = vmatpush1.msra.mxu0 0.0
        %463 = vmatprep.subr.mxu0 0.0
        %464 = vmatpush1.msra.mxu0 0.0
        %465 = vmatprep.subr.mxu0 0.0
        %466 = vmatpush1.msra.mxu0 0.0
        %467 = vmatprep.subr.mxu0 0.0
        %468 = vmatpush1.msra.mxu0 0.0
        %469 = vmatprep.subr.mxu0 0.0
        %470 = vmatpush1.msra.mxu0 0.0
        %471 = vmatprep.subr.mxu0 0.0
        %472 = vmatpush1.msra.mxu0 0.0
        %473 = vmatprep.subr.mxu0 0.0
        %474 = vmatpush1.msra.mxu0 0.0
        %475 = vmatprep.subr.mxu0 0.0
        %476 = vmatpush1.msra.mxu0 0.0
        %477 = vmatprep.subr.mxu0 0.0
        %478 = vmatpush1.msra.mxu0 0.0
        %479 = vmatprep.mubr.f32.mxu0 0.0
        %480 = vmatmul.mubr.f32.gmra.mrb[0].mxu0 %v289
        %v481 = vpop.f32.mrb[0].mxu0
        %v482 = vadd.f32 %v412, %v481
        %v483 = vpop.f32.mrb[0].mxu0
        %484 = vdwg.mxu0
        %v485 = vmax.f32 %v482, 0.0
        %v486 = vrot.slane %v485, 7
        %v487 = vsel %vm284, %v486, 0.0
        %v488 = vrot.slane %v485, 1
        %v489 = vsel %vm285, %v488, 0.0
        %v490 = vld [vmem:[#allocation7] sm:$0xff]
        %v491 = vld [vmem:[#allocation7 + $0x8] sm:$0xff]
        %v492 = vld [vmem:[#allocation7 + $0x10] sm:$0xff]
        %v493 = vld [vmem:[#allocation7 + $0x18] sm:$0xff]
        %v494 = vld [vmem:[#allocation7 + $0x20] sm:$0xff]
        %v495 = vld [vmem:[#allocation7 + $0x28] sm:$0xff]
        %v496 = vld [vmem:[#allocation7 + $0x30] sm:$0xff]
        %v497 = vld [vmem:[#allocation7 + $0x38] sm:$0xff]
        %v498 = vld [vmem:[#allocation7 + $0x40] sm:$0xff]
        %v499 = vld [vmem:[#allocation7 + $0x48] sm:$0xff]
        %v500 = vld [vmem:[#allocation7 + $0x50] sm:$0xff]
        %v501 = vld [vmem:[#allocation7 + $0x58] sm:$0xff]
        %v502 = vld [vmem:[#allocation7 + $0x60] sm:$0xff]
        %v503 = vld [vmem:[#allocation7 + $0x68] sm:$0xff]
        %v504 = vld [vmem:[#allocation7 + $0x70] sm:$0xff]
        %v505 = vld [vmem:[#allocation7 + $0x78] sm:$0xff]
        %v506 = vld [vmem:[#allocation7 + $0x80] sm:$0xff]
        %v507 = vld [vmem:[#allocation7 + $0x88] sm:$0xff]
        %v508 = vld [vmem:[#allocation7 + $0x90] sm:$0xff]
        %v509 = vld [vmem:[#allocation7 + $0x98] sm:$0xff]
        %v510 = vld [vmem:[#allocation7 + $0xa0] sm:$0xff]
        %v511 = vld [vmem:[#allocation7 + $0xa8] sm:$0xff]
        %v512 = vld [vmem:[#allocation7 + $0xb0] sm:$0xff]
        %v513 = vld [vmem:[#allocation7 + $0xb8] sm:$0xff]
        %v514 = vld [vmem:[#allocation7 + $0xc0] sm:$0xff]
        %v515 = vld [vmem:[#allocation7 + $0xc8] sm:$0xff]
        %v516 = vld [vmem:[#allocation7 + $0xd0] sm:$0xff]
        %v517 = vld [vmem:[#allocation7 + $0xd8] sm:$0xff]
        %v518 = vld [vmem:[#allocation7 + $0xe0] sm:$0xff]
        %v519 = vld [vmem:[#allocation7 + $0xe8] sm:$0xff]
        %v520 = vld [vmem:[#allocation7 + $0xf0] sm:$0xff]
        %v521 = vld [vmem:[#allocation7 + $0xf8] sm:$0xff]
        %v522 = vld [vmem:[#allocation7 + $0x100] sm:$0xff]
        %v523 = vld [vmem:[#allocation7 + $0x108] sm:$0xff]
        %v524 = vld [vmem:[#allocation7 + $0x110] sm:$0xff]
        %v525 = vld [vmem:[#allocation7 + $0x118] sm:$0xff]
        %v526 = vld [vmem:[#allocation7 + $0x120] sm:$0xff]
        %v527 = vld [vmem:[#allocation7 + $0x128] sm:$0xff]
        %v528 = vld [vmem:[#allocation7 + $0x130] sm:$0xff]
        %v529 = vld [vmem:[#allocation7 + $0x138] sm:$0xff]
        %v530 = vld [vmem:[#allocation7 + $0x140] sm:$0xff]
        %v531 = vld [vmem:[#allocation7 + $0x148] sm:$0xff]
        %v532 = vld [vmem:[#allocation7 + $0x150] sm:$0xff]
        %v533 = vld [vmem:[#allocation7 + $0x158] sm:$0xff]
        %v534 = vld [vmem:[#allocation7 + $0x160] sm:$0xff]
        %v535 = vld [vmem:[#allocation7 + $0x168] sm:$0xff]
        %v536 = vld [vmem:[#allocation7 + $0x170] sm:$0xff]
        %v537 = vld [vmem:[#allocation7 + $0x178] sm:$0xff]
        %v538 = vld [vmem:[%s4] sm:$0x1]
        %v540 = vlaneseq
        %v541 = vshrl.u32 %v540, 7
        %v542 = vsub.s32 0, %v541
        %v543 = vrot.slane %v538, %v542
        %545 = vmatprep.subr.mxu0 0.0
        %546 = vmatpush1.msra.mxu0 %v490
        %547 = vmatprep.subr.mxu0 0.0
        %548 = vmatpush1.msra.mxu0 %v491
        %549 = vmatprep.subr.mxu0 0.0
        %550 = vmatpush1.msra.mxu0 %v492
        %551 = vmatprep.subr.mxu0 0.0
        %552 = vmatpush1.msra.mxu0 %v493
        %553 = vmatprep.subr.mxu0 0.0
        %554 = vmatpush1.msra.mxu0 %v494
        %555 = vmatprep.subr.mxu0 0.0
        %556 = vmatpush1.msra.mxu0 %v495
        %557 = vmatprep.subr.mxu0 0.0
        %558 = vmatpush1.msra.mxu0 %v496
        %559 = vmatprep.subr.mxu0 0.0
        %560 = vmatpush1.msra.mxu0 %v497
        %561 = vmatprep.subr.mxu0 0.0
        %562 = vmatpush1.msra.mxu0 %v498
        %563 = vmatprep.subr.mxu0 0.0
        %564 = vmatpush1.msra.mxu0 %v499
        %565 = vmatprep.subr.mxu0 0.0
        %566 = vmatpush1.msra.mxu0 %v500
        %567 = vmatprep.subr.mxu0 0.0
        %568 = vmatpush1.msra.mxu0 %v501
        %569 = vmatprep.subr.mxu0 0.0
        %570 = vmatpush1.msra.mxu0 %v502
        %571 = vmatprep.subr.mxu0 0.0
        %572 = vmatpush1.msra.mxu0 %v503
        %573 = vmatprep.subr.mxu0 0.0
        %574 = vmatpush1.msra.mxu0 %v504
        %575 = vmatprep.subr.mxu0 0.0
        %576 = vmatpush1.msra.mxu0 %v505
        %577 = vmatprep.subr.mxu0 0.0
        %578 = vmatpush1.msra.mxu0 %v506
        %579 = vmatprep.subr.mxu0 0.0
        %580 = vmatpush1.msra.mxu0 %v507
        %581 = vmatprep.subr.mxu0 0.0
        %582 = vmatpush1.msra.mxu0 %v508
        %583 = vmatprep.subr.mxu0 0.0
        %584 = vmatpush1.msra.mxu0 %v509
        %585 = vmatprep.subr.mxu0 0.0
        %586 = vmatpush1.msra.mxu0 %v510
        %587 = vmatprep.subr.mxu0 0.0
        %588 = vmatpush1.msra.mxu0 %v511
        %589 = vmatprep.subr.mxu0 0.0
        %590 = vmatpush1.msra.mxu0 %v512
        %591 = vmatprep.subr.mxu0 0.0
        %592 = vmatpush1.msra.mxu0 %v513
        %593 = vmatprep.subr.mxu0 0.0
        %594 = vmatpush1.msra.mxu0 %v514
        %595 = vmatprep.subr.mxu0 0.0
        %596 = vmatpush1.msra.mxu0 %v515
        %597 = vmatprep.subr.mxu0 0.0
        %598 = vmatpush1.msra.mxu0 %v516
        %599 = vmatprep.subr.mxu0 0.0
        %600 = vmatpush1.msra.mxu0 %v517
        %601 = vmatprep.subr.mxu0 0.0
        %602 = vmatpush1.msra.mxu0 %v518
        %603 = vmatprep.subr.mxu0 0.0
        %604 = vmatpush1.msra.mxu0 %v519
        %605 = vmatprep.subr.mxu0 0.0
        %606 = vmatpush1.msra.mxu0 %v520
        %607 = vmatprep.subr.mxu0 0.0
        %608 = vmatpush1.msra.mxu0 %v521
        %609 = vmatprep.mubr.f32.mxu0 %v485
        %610 = vmatmul.mubr.f32.gmra.mrb[0].mxu0 %v487
        %v611 = vpop.f32.mrb[0].mxu0
        %v612 = vadd.f32 %v543, %v611
        %v613 = vpop.f32.mrb[0].mxu0
        %614 = vdwg.mxu0
        %615 = vmatprep.subr.mxu0 0.0
        %616 = vmatpush1.msra.mxu0 %v522
        %617 = vmatprep.subr.mxu0 0.0
        %618 = vmatpush1.msra.mxu0 %v523
        %619 = vmatprep.subr.mxu0 0.0
        %620 = vmatpush1.msra.mxu0 %v524
        %621 = vmatprep.subr.mxu0 0.0
        %622 = vmatpush1.msra.mxu0 %v525
        %623 = vmatprep.subr.mxu0 0.0
        %624 = vmatpush1.msra.mxu0 %v526
        %625 = vmatprep.subr.mxu0 0.0
        %626 = vmatpush1.msra.mxu0 %v527
        %627 = vmatprep.subr.mxu0 0.0
        %628 = vmatpush1.msra.mxu0 %v528
        %629 = vmatprep.subr.mxu0 0.0
        %630 = vmatpush1.msra.mxu0 %v529
        %631 = vmatprep.subr.mxu0 0.0
        %632 = vmatpush1.msra.mxu0 %v530
        %633 = vmatprep.subr.mxu0 0.0
        %634 = vmatpush1.msra.mxu0 %v531
        %635 = vmatprep.subr.mxu0 0.0
        %636 = vmatpush1.msra.mxu0 %v532
        %637 = vmatprep.subr.mxu0 0.0
        %638 = vmatpush1.msra.mxu0 %v533
        %639 = vmatprep.subr.mxu0 0.0
        %640 = vmatpush1.msra.mxu0 %v534
        %641 = vmatprep.subr.mxu0 0.0
        %642 = vmatpush1.msra.mxu0 %v535
        %643 = vmatprep.subr.mxu0 0.0
        %644 = vmatpush1.msra.mxu0 %v536
        %645 = vmatprep.subr.mxu0 0.0
        %646 = vmatpush1.msra.mxu0 %v537
        %647 = vmatprep.subr.mxu0 0.0
        %648 = vmatpush1.msra.mxu0 0.0
        %649 = vmatprep.subr.mxu0 0.0
        %650 = vmatpush1.msra.mxu0 0.0
        %651 = vmatprep.subr.mxu0 0.0
        %652 = vmatpush1.msra.mxu0 0.0
        %653 = vmatprep.subr.mxu0 0.0
        %654 = vmatpush1.msra.mxu0 0.0
        %655 = vmatprep.subr.mxu0 0.0
        %656 = vmatpush1.msra.mxu0 0.0
        %657 = vmatprep.subr.mxu0 0.0
        %658 = vmatpush1.msra.mxu0 0.0
        %659 = vmatprep.subr.mxu0 0.0
        %660 = vmatpush1.msra.mxu0 0.0
        %661 = vmatprep.subr.mxu0 0.0
        %662 = vmatpush1.msra.mxu0 0.0
        %663 = vmatprep.subr.mxu0 0.0
        %664 = vmatpush1.msra.mxu0 0.0
        %665 = vmatprep.subr.mxu0 0.0
        %666 = vmatpush1.msra.mxu0 0.0
        %667 = vmatprep.subr.mxu0 0.0
        %668 = vmatpush1.msra.mxu0 0.0
        %669 = vmatprep.subr.mxu0 0.0
        %670 = vmatpush1.msra.mxu0 0.0
        %671 = vmatprep.subr.mxu0 0.0
        %672 = vmatpush1.msra.mxu0 0.0
        %673 = vmatprep.subr.mxu0 0.0
        %674 = vmatpush1.msra.mxu0 0.0
        %675 = vmatprep.subr.mxu0 0.0
        %676 = vmatpush1.msra.mxu0 0.0
        %677 = vmatprep.subr.mxu0 0.0
        %678 = vmatpush1.msra.mxu0 0.0
        %679 = vmatprep.mubr.f32.mxu0 0.0
        %680 = vmatmul.mubr.f32.gmra.mrb[0].mxu0 %v489
        %v681 = vpop.f32.mrb[0].mxu0
        %v682 = vadd.f32 %v612, %v681
        %v683 = vpop.f32.mrb[0].mxu0
        %684 = vdwg.mxu0
        %v685 = vadd.f32 %v682, %v269
        %v686 = vmax.f32 %v685, 0.0
        %687 = vst [vmem:[%s268] sm:$0xff] %v686
        %s688 = sand.u32 %s141, 1
        %s689 = scalar_lea.sflag [#allocation4], %s688
        %s690 = sand.u32 %s141, 1
        %s691 = smul.addr %s690, 8
        %s692 = scalar_lea.vmem [#allocation8], %s691
        // Predicated region
        $region53: #{tpu_custom_call.1} parent=39 // pred_check
          %p693 = pneg %p151
        $region54: #{tpu_custom_call.1} parent=39 // pred_check_branch
          %695 = sbr.rel (%p693) target = $region56
        $region55: #{tpu_custom_call.1} parent=39 // pred_region
          %s697 = ssub.s32 128, 128
          %698 = vsyncadd %s689, %s697
          %s699 = smul.addr %s23, 128
          %s700 = scalar_lea.hbm %s5, %s699
          %s702 = sshll.u32 %s692, 4
          %s703 = int_to_ptr.vmem [resolvable:$true] %s702
          %705 = dma.vmem_to_hbm [thread:$0]  %s703, 128, %s700, %s689
        $region56: #{tpu_custom_call.1} parent=39 // pred_fallthru
          _
      $region40: #{tpu_custom_call.1} parent=5 // pred_fallthru
        _
      %p706 = scmp.le.s32.totalorder 2, %s18
      // Predicated region
      $region57: #{tpu_custom_call.1} parent=5 // pred_check
        %p707 = pneg %p706
      $region58: #{tpu_custom_call.1} parent=5 // pred_check_branch
        %709 = sbr.rel (%p707) target = $region60
      $region59: #{tpu_custom_call.1} parent=5 // pred_region
        %s710 = ssub.s32 %s18, 2
        // Predicated region
        $region61: #{tpu_custom_call.1} parent=59 // pred_check
          %p711 = pneg %p157
        $region62: #{tpu_custom_call.1} parent=59 // pred_check_branch
          %713 = sbr.rel (%p711) target = $region64
        $region63: #{tpu_custom_call.1} parent=59 // pred_region
          %s714 = sand.u32 %s142, 1
          %s715 = scalar_lea.sflag [#allocation4], %s714
          %s716 = sand.u32 %s142, 1
          %s717 = smul.addr %s716, 8
          %s718 = scalar_lea.vmem [#allocation8], %s717
          %719 = dma.done %s715, 128
        $region64: #{tpu_custom_call.1} parent=59 // pred_fallthru
          _
      $region60: #{tpu_custom_call.1} parent=5 // pred_fallthru
        _
    $region6: #{tpu_custom_call.1} parent=1 // loop_footer
      %s22 = sadd.s32 1, %s18
    $region7: #{tpu_custom_call.1} parent=1 // loop_footer_branch
      %17 = sbr.rel target = $region3
    $region8: #{tpu_custom_call.1} parent=1 // loop_exit
      _
    %720 = vsyncpa [#allocation3], 1
    %s721 = scalar_lea.sflag [#allocation3], 1
    %722 = vsyncpa %s721, 1
    %723 = vsyncpa [#allocation6], 1
    %724 = vsyncpa [#allocation4], 1
    %s725 = scalar_lea.sflag [#allocation4], 1
    %726 = vsyncpa %s725, 1

</llo_original>
